<compile_context>
chip_gen: v5e
topology: v5e:2x2
jax: 0.10.0
libtpu: 0.0.40
codegen_flags: <defaults>
</compile_context>

<pallas_src>
import math

import jax
import jax.numpy as jnp
from jax.experimental import pallas as pl
from jax.experimental.pallas import tpu as pltpu


# -----------------------------------------------------------------------------
# Wrapper-side helpers: 4x4 / stride-2 / pad-1 im2col and weight folding.
# -----------------------------------------------------------------------------
def _im2col_s2(x_nhwc):
    """Full 4x4 / stride-2 / pad-1 patches, (ky, kx, c) channel ordering.

    Returns (patches, (N, Ho, Wo)) with patches of shape (N*Ho*Wo, 16*C).
    """
    N, H, W, C = x_nhwc.shape
    Ho, Wo = H // 2, W // 2
    xp = jnp.pad(x_nhwc, ((0, 0), (1, 1), (1, 1), (0, 0)))
    cols = []
    for ky in range(4):
        for kx in range(4):
            cols.append(xp[:, ky:ky + 2 * Ho - 1:2, kx:kx + 2 * Wo - 1:2, :])
    patches = jnp.concatenate(cols, axis=-1)            # (N, Ho, Wo, 16*C)
    return patches.reshape(N * Ho * Wo, 16 * C), (N, Ho, Wo)


def _fold_w(w_pt):
    """PyTorch (Co, Ci, 4, 4) -> (16*Ci, Co) matching _im2col_s2 ordering."""
    Co, Ci = w_pt.shape[0], w_pt.shape[1]
    return jnp.transpose(w_pt, (2, 3, 1, 0)).reshape(16 * Ci, Co)


def _pick_m_tile(M):
    """Largest M tile (multiple of 8, <= 512) dividing M while keeping >= 2
    grid steps so both v7x TensorCores get independent parallel work."""
    for mt in (512, 256, 128, 64, 32, 16, 8):
        if M % mt == 0 and M // mt >= 2:
            return mt
    return M


# -----------------------------------------------------------------------------
# Kernel A: fused  im2col-matmul -> folded-BN affine -> LeakyReLU(0.2)
# One grid step = one (Mt, Co) output tile; single MXU matmul, no slicing.
# -----------------------------------------------------------------------------
def _mm_bn_lrelu_kernel(x_ref, w_ref, s_ref, b_ref, o_ref):
    acc = jnp.dot(x_ref[...], w_ref[...], preferred_element_type=jnp.float32)
    y = acc * s_ref[...] + b_ref[...]
    o_ref[...] = jnp.maximum(y, 0.2 * y).astype(o_ref.dtype)   # LeakyReLU(0.2)


def conv4x4_s2_bn_lrelu(x_nhwc, w_pt, scale, bias, *, out_dtype=jnp.bfloat16):
    """LeakyReLU_0.2( BN_folded( Conv2d(x, w_pt, k=4, stride=2, pad=1) ) )."""
    N, H, W, Ci = x_nhwc.shape
    Co = w_pt.shape[0]
    patches, (_, Ho, Wo) = _im2col_s2(x_nhwc)
    patches = patches.astype(jnp.bfloat16)
    K = 16 * Ci
    M = N * Ho * Wo                                     # batch merged into M
    mt = _pick_m_tile(M)

    w = _fold_w(w_pt).astype(jnp.bfloat16)
    s = scale.reshape(1, Co).astype(jnp.float32)
    b = bias.reshape(1, Co).astype(jnp.float32)

    out = pl.pallas_call(
        _mm_bn_lrelu_kernel,
        out_shape=jax.ShapeDtypeStruct((M, Co), out_dtype),
        grid_spec=pltpu.PrefetchScalarGridSpec(
            num_scalar_prefetch=0,
            grid=(M // mt,),
            in_specs=[
                pl.BlockSpec((mt, K), lambda i: (i, 0)),
                pl.BlockSpec((K, Co), lambda i: (0, 0)),
                pl.BlockSpec((1, Co), lambda i: (0, 0)),
                pl.BlockSpec((1, Co), lambda i: (0, 0)),
            ],
            out_specs=pl.BlockSpec((mt, Co), lambda i: (i, 0)),
        ),
        compiler_params=pltpu.CompilerParams(
            dimension_semantics=("parallel",)),
    )(patches, w, s, b)
    return out.reshape(N, Ho, Wo, Co)


# -----------------------------------------------------------------------------
# Kernel B: layer-4 conv (k=4,s=2,p=1) + BN + LeakyReLU fused with the head
# Conv2d(512, 1, k=4, VALID) + Sigmoid.  One grid step per image: a single
# (16, 4096) x (4096, 512) matmul, then a VPU multiply-reduce against the
# lane-dense (16, 512) head weight.
# -----------------------------------------------------------------------------
def _final_conv_head_kernel(x_ref, w_ref, s_ref, b_ref, wh_ref, bh_ref, o_ref):
    acc = jnp.dot(x_ref[...], w_ref[...], preferred_element_type=jnp.float32)
    y = acc * s_ref[...] + b_ref[...]
    y = jnp.maximum(y, 0.2 * y)                          # LeakyReLU(0.2)
    z = jnp.sum(y * wh_ref[...], axis=1, keepdims=True)  # (16, 1)   lane reduce
    z = jnp.sum(z, axis=0, keepdims=True) + bh_ref[...]  # (1, 1)    sublane reduce
    o_ref[0] = (1.0 / (1.0 + jnp.exp(-z))).astype(o_ref.dtype)   # sigmoid


def conv4x4_s2_bn_lrelu_head_sigmoid(x_nhwc, w4_pt, scale4, bias4, wh_pt, bh):
    N, H, W, Ci = x_nhwc.shape                           # (N, 8, 8, 256)
    Co = w4_pt.shape[0]                                  # 512
    patches, (_, Ho, Wo) = _im2col_s2(x_nhwc)            # (N*16, 4096)
    assert (Ho, Wo) == (4, 4) and wh_pt.shape[0] == 1, (
        "fused head assumes the canonical 64x64 discriminator input")
    patches = patches.astype(jnp.bfloat16)
    K = 16 * Ci
    P = Ho * Wo                                          # 16 positions / image

    w4 = _fold_w(w4_pt).astype(jnp.bfloat16)
    s = scale4.reshape(1, Co).astype(jnp.float32)
    b = bias4.reshape(1, Co).astype(jnp.float32)
    # Head weight stored lane-dense as (16, 512): wh[ky*4+kx, c] = w[0, c, ky, kx].
    wh = jnp.transpose(wh_pt, (2, 3, 1, 0)).reshape(P, Co).astype(jnp.float32)
    bhh = bh.reshape(1, 1).astype(jnp.float32)

    out = pl.pallas_call(
        _final_conv_head_kernel,
        out_shape=jax.ShapeDtypeStruct((N, 1, 1), jnp.float32),
        grid_spec=pltpu.PrefetchScalarGridSpec(
            num_scalar_prefetch=0,
            grid=(N,),
            in_specs=[
                pl.BlockSpec((P, K), lambda i: (i, 0)),
                pl.BlockSpec((K, Co), lambda i: (0, 0)),
                pl.BlockSpec((1, Co), lambda i: (0, 0)),
                pl.BlockSpec((1, Co), lambda i: (0, 0)),
                pl.BlockSpec((P, Co), lambda i: (0, 0)),
                pl.BlockSpec((1, 1), lambda i: (0, 0)),
            ],
            out_specs=pl.BlockSpec((1, 1, 1), lambda i: (i, 0, 0)),
        ),
        compiler_params=pltpu.CompilerParams(
            dimension_semantics=("parallel",)),
    )(patches, w4, s, b, wh, bhh)
    return out.reshape(N, 1, 1, 1)


# -----------------------------------------------------------------------------
# Full discriminator forward (Pallas path) and pure-JAX reference.
# -----------------------------------------------------------------------------
def discriminator_forward(x_nchw, params):
    x = jnp.transpose(x_nchw, (0, 2, 3, 1)).astype(jnp.float32)   # NHWC
    for layer in params[:3]:
        x = conv4x4_s2_bn_lrelu(x, layer["w"], layer["scale"], layer["bias"])
    l4, head = params[3], params[4]
    return conv4x4_s2_bn_lrelu_head_sigmoid(
        x, l4["w"], l4["scale"], l4["bias"], head["w"], head["conv_b"])


def discriminator_reference(x_nchw, params):
    eps = 1e-5
    x = jnp.transpose(x_nchw, (0, 2, 3, 1)).astype(jnp.float32)

    def conv(inp, w_pt, stride, padding):
        w = jnp.transpose(w_pt, (2, 3, 1, 0))                     # HWIO
        return jax.lax.conv_general_dilated(
            inp, w, window_strides=(stride, stride), padding=padding,
            dimension_numbers=("NHWC", "HWIO", "NHWC"))

    for layer in params[:4]:
        x = conv(x, layer["w"], 2, ((1, 1), (1, 1))) + layer["conv_b"]
        if layer["bn"] is not None:
            gamma, beta, mean, var = layer["bn"]
            x = (x - mean) / jnp.sqrt(var + eps) * gamma + beta
        x = jnp.where(x > 0, x, 0.2 * x)                          # LeakyReLU(0.2)

    z = conv(x, params[4]["w"], 1, "VALID") + params[4]["conv_b"]
    y = jax.nn.sigmoid(z)
    return jnp.transpose(y, (0, 3, 1, 2))                         # NCHW


# -----------------------------------------------------------------------------
# Deterministic synthetic parameters (inference-mode folded BatchNorm).
# -----------------------------------------------------------------------------
def init_discriminator_params(key, in_channels):
    chans = [in_channels, 64, 128, 256, 512]
    eps = 1e-5
    keys = jax.random.split(key, 32)
    ki = 0
    params = []
    for li in range(4):
        ci, co = chans[li], chans[li + 1]
        w = jax.random.normal(keys[ki], (co, ci, 4, 4), jnp.float32) / math.sqrt(16 * ci)
        ki += 1
        cb = 0.05 * jax.random.normal(keys[ki], (co,), jnp.float32)
        ki += 1
        if li == 0:
            scale = jnp.ones((co,), jnp.float32)
            bias = cb
            bn = None
        else:
            gamma = 1.0 + 0.1 * jax.random.normal(keys[ki], (co,), jnp.float32); ki += 1
            beta = 0.1 * jax.random.normal(keys[ki], (co,), jnp.float32); ki += 1
            mean = 0.1 * jax.random.normal(keys[ki], (co,), jnp.float32); ki += 1
            var = 1.0 + 0.1 * jnp.abs(jax.random.normal(keys[ki], (co,), jnp.float32)); ki += 1
            scale = gamma / jnp.sqrt(var + eps)
            bias = beta + (cb - mean) * scale
            bn = (gamma, beta, mean, var)
        params.append(dict(w=w, conv_b=cb, scale=scale, bias=bias, bn=bn))

    w5 = jax.random.normal(keys[ki], (1, 512, 4, 4), jnp.float32) / math.sqrt(16 * 512)
    ki += 1
    b5 = 0.05 * jax.random.normal(keys[ki], (1,), jnp.float32)
    params.append(dict(w=w5, conv_b=b5))
    return params


# -----------------------------------------------------------------------------
if __name__ == "__main__":
    key = jax.random.PRNGKey(0)
    kx, kp = jax.random.split(key)

    # Canonical discriminator input: the 4x4-VALID head requires H = W = 64.
    N, C, H, W = 2, 4, 64, 64
    x = jax.random.normal(kx, (N, C, H, W), jnp.float32)
    params = init_discriminator_params(kp, C)

    out = jax.block_until_ready(discriminator_forward(x, params))
    ref = jax.block_until_ready(discriminator_reference(x, params))

    assert out.shape == (N, 1, 1, 1), out.shape
    max_err = float(jnp.max(jnp.abs(out - ref)))
    assert max_err < 3e-2, f"mismatch vs reference, max_err={max_err}"

    print("KERNEL_OK")
</pallas_src>

<mosaic_0001>
module attributes {stable_mosaic.version = 11 : i64} {
  func.func @_mm_bn_lrelu_kernel(%arg0: i32, %arg1: memref<512x64xbf16, #tpu.memory_space<vmem>>, %arg2: memref<64x64xbf16, #tpu.memory_space<vmem>>, %arg3: memref<1x64xf32, #tpu.memory_space<vmem>>, %arg4: memref<1x64xf32, #tpu.memory_space<vmem>>, %arg5: memref<512x64xbf16, #tpu.memory_space<vmem>>) attributes {dimension_semantics = [#tpu.dimension_semantics<parallel>], iteration_bounds = array<i64: 4>, scalar_prefetch = 0 : i64, scratch_operands = 0 : i64, tpu.core_type = #tpu.core_type<tc>, window_params = [{transform_indices = @transform_0, window_bounds = array<i64: 512, 64>}, {pipeline_mode = #tpu.pipeline_mode<synchronous>, transform_indices = @transform_1, window_bounds = array<i64: 64, 64>}, {pipeline_mode = #tpu.pipeline_mode<synchronous>, transform_indices = @transform_2, window_bounds = array<i64: 1, 64>}, {pipeline_mode = #tpu.pipeline_mode<synchronous>, transform_indices = @transform_3, window_bounds = array<i64: 1, 64>}, {transform_indices = @transform_4, window_bounds = array<i64: 512, 64>}]} {
    %c0 = arith.constant 0 : index
    %c0_0 = arith.constant 0 : index
    %0 = vector.load %arg1[%c0, %c0_0] : memref<512x64xbf16, #tpu.memory_space<vmem>>, vector<512x64xbf16>
    %c0_1 = arith.constant 0 : index
    %c0_2 = arith.constant 0 : index
    %1 = vector.load %arg2[%c0_1, %c0_2] : memref<64x64xbf16, #tpu.memory_space<vmem>>, vector<64x64xbf16>
    %cst = arith.constant dense<0.000000e+00> : vector<512x64xf32>
    %2 = tpu.matmul %0, %1, %cst {dimension_numbers = #tpu.dot_dimension_numbers<[1], [0], [0], [1], [0, 0, 1, 1], [], []>} : vector<512x64xbf16>, vector<64x64xbf16>, vector<512x64xf32> -> vector<512x64xf32>
    %c0_3 = arith.constant 0 : index
    %c0_4 = arith.constant 0 : index
    %3 = vector.load %arg3[%c0_3, %c0_4] : memref<1x64xf32, #tpu.memory_space<vmem>>, vector<1x64xf32>
    %4 = vector.broadcast %3 : vector<1x64xf32> to vector<512x64xf32>
    %5 = arith.mulf %2, %4 : vector<512x64xf32>
    %c0_5 = arith.constant 0 : index
    %c0_6 = arith.constant 0 : index
    %6 = vector.load %arg4[%c0_5, %c0_6] : memref<1x64xf32, #tpu.memory_space<vmem>>, vector<1x64xf32>
    %7 = vector.broadcast %6 : vector<1x64xf32> to vector<512x64xf32>
    %8 = arith.addf %5, %7 : vector<512x64xf32>
    %cst_7 = arith.constant 2.000000e-01 : f32
    %9 = vector.broadcast %cst_7 : f32 to vector<512x64xf32>
    %10 = arith.mulf %9, %8 : vector<512x64xf32>
    %11 = arith.maximumf %8, %10 : vector<512x64xf32>
    %12 = arith.truncf %11 : vector<512x64xf32> to vector<512x64xbf16>
    %c0_8 = arith.constant 0 : index
    %c0_9 = arith.constant 0 : index
    %13 = vector.load %arg5[%c0_8, %c0_9] : memref<512x64xbf16, #tpu.memory_space<vmem>>, vector<512x64xbf16>
    tpu.vector_store %arg5[%c0_8, %c0_9], %12 {strides = array<i32>} : memref<512x64xbf16, #tpu.memory_space<vmem>>, vector<512x64xbf16>,
    return
  }
  func.func @transform_0(%arg0: i32) -> (i32, i32) {
    %c0_i32 = arith.constant 0 : i32
    %c0_i32_0 = arith.constant 0 : i32
    return %arg0, %c0_i32 : i32, i32
  }
  func.func @transform_1(%arg0: i32) -> (i32, i32) {
    %c0_i32 = arith.constant 0 : i32
    %c0_i32_0 = arith.constant 0 : i32
    %c0_i32_1 = arith.constant 0 : i32
    return %c0_i32, %c0_i32_0 : i32, i32
  }
  func.func @transform_2(%arg0: i32) -> (i32, i32) {
    %c0_i32 = arith.constant 0 : i32
    %c0_i32_0 = arith.constant 0 : i32
    %c0_i32_1 = arith.constant 0 : i32
    return %c0_i32, %c0_i32_0 : i32, i32
  }
  func.func @transform_3(%arg0: i32) -> (i32, i32) {
    %c0_i32 = arith.constant 0 : i32
    %c0_i32_0 = arith.constant 0 : i32
    %c0_i32_1 = arith.constant 0 : i32
    return %c0_i32, %c0_i32_0 : i32, i32
  }
  func.func @transform_4(%arg0: i32) -> (i32, i32) {
    %c0_i32 = arith.constant 0 : i32
    %c0_i32_0 = arith.constant 0 : i32
    return %arg0, %c0_i32 : i32, i32
  }
}

</mosaic_0001>

<llo_original>
// kernel: tpu_custom_call.1
$region0: #{tpu_custom_call.1}
  #allocation0 [shape = 'u32[]', space=smem, size = 0x4, offset = 0x4, fixed_abs, tag = 'smem constant byte address 0x4 - core index']
  #allocation1 [shape = 'u32[72,128]{1,0:T(1,128)}', space=vmem, size = 0x9000, scoped, tag = 'internal scratch']
  %s0 = inlined_call_operand.vmem [shape: bf16[2048,64], index: 0, kind: input, shape index: {}]
  %s1 = inlined_call_operand.vmem [shape: bf16[64,64], index: 1, kind: input, shape index: {}]
  %s2 = inlined_call_operand.vmem [shape: f32[1,64], index: 2, kind: input, shape index: {}]
  %s3 = inlined_call_operand.vmem [shape: f32[1,64], index: 3, kind: input, shape index: {}]
  %s4 = inlined_call_operand.vmem [shape: bf16[2048,64], index: 4, kind: output, shape index: {}]
  %s5 = sld [smem:[#allocation0]]
  $region49: #{tpu_custom_call.1} parent=0
    _
  %s7 = ssub.s32 1, %s5
  %s8 = scalar_select 0, %s7, %s5
  loop: start=0, step=1, limit=6
  $region2: #{tpu_custom_call.1} parent=0 // loop_pre_header
    _
  $region3: #{tpu_custom_call.1} parent=0 // loop_header
    %s10 = sphi 0, %s14
    %p11 = scmp.ge.s32.totalorder %s10, 6
    %s20 = sphi 0, %s22
    %s23 = sphi 0, %s20
    %s24 = sphi 0, %s23
    %s40 = sphi 0, %s24
    %s44 = sphi 0, %s44
    %s46 = sphi 0, %s44
    %s47 = sphi 0, %s46
    %s61 = sphi 0, %s47
    %s65 = sphi 0, %s65
    %s67 = sphi 0, %s65
    %s68 = sphi 0, %s67
    %s82 = sphi 0, %s68
    %s86 = sphi 0, %s86
    %s88 = sphi 0, %s86
    %s89 = sphi 0, %s88
    %s103 = sphi 0, %s89
    %s109 = sphi 0, %s111
    %s112 = sphi 0, %s109
    %s113 = sphi 0, %s112
    %s129 = sphi 0, %s113
  $region4: #{tpu_custom_call.1} parent=0 // loop_header_branch
    %13 = sbr.rel (%p11) target = $region8
  $region5: #{tpu_custom_call.1} parent=0 // loop_body
    %s15 = ssub.s32 %s10, 1
    %s16 = ssub.s32 %s10, 2
    %s17 = sadd.s32 %s10, 1
    %s18 = ssub.s32 %s10, %s17
    %p19 = scmp.eq.s32.totalorder %s18, 0
    %s21 = sadd.s32 %s20, 1
    %s22 = scalar_select %p19, %s20, %s21
    %p25 = pneg %p19
    %p26 = scmp.eq.s32.totalorder %s10, 3
    %p27 = por %p25, %p26
    %p28 = scmp.ne.s32.totalorder %s20, %s23
    %p29 = scmp.eq.s32.totalorder %s10, 0
    %p30 = por %p28, %p29
    %p31 = scmp.ne.s32.totalorder %s20, %s23
    %p32 = scmp.eq.s32.totalorder %s15, 3
    %p33 = por %p31, %p32
    %p34 = scmp.ne.s32.totalorder %s23, %s24
    %p35 = scmp.eq.s32.totalorder %s15, 0
    %p36 = por %p34, %p35
    %p37 = scmp.ne.s32.totalorder %s23, %s24
    %p38 = scmp.eq.s32.totalorder %s16, 3
    %p39 = por %p37, %p38
    %p41 = scmp.ne.s32.totalorder %s24, %s40
    %p42 = scmp.eq.s32.totalorder %s16, 0
    %p43 = por %p41, %p42
    %s45 = sadd.s32 %s44, 1
    %p48 = scmp.eq.s32.totalorder %s10, 3
    %p49 = scmp.ne.s32.totalorder %s44, %s46
    %p50 = scmp.eq.s32.totalorder %s10, 0
    %p51 = por %p49, %p50
    %p52 = scmp.ne.s32.totalorder %s44, %s46
    %p53 = scmp.eq.s32.totalorder %s15, 3
    %p54 = por %p52, %p53
    %p55 = scmp.ne.s32.totalorder %s46, %s47
    %p56 = scmp.eq.s32.totalorder %s15, 0
    %p57 = por %p55, %p56
    %p58 = scmp.ne.s32.totalorder %s46, %s47
    %p59 = scmp.eq.s32.totalorder %s16, 3
    %p60 = por %p58, %p59
    %p62 = scmp.ne.s32.totalorder %s47, %s61
    %p63 = scmp.eq.s32.totalorder %s16, 0
    %p64 = por %p62, %p63
    %s66 = sadd.s32 %s65, 1
    %p69 = scmp.eq.s32.totalorder %s10, 3
    %p70 = scmp.ne.s32.totalorder %s65, %s67
    %p71 = scmp.eq.s32.totalorder %s10, 0
    %p72 = por %p70, %p71
    %p73 = scmp.ne.s32.totalorder %s65, %s67
    %p74 = scmp.eq.s32.totalorder %s15, 3
    %p75 = por %p73, %p74
    %p76 = scmp.ne.s32.totalorder %s67, %s68
    %p77 = scmp.eq.s32.totalorder %s15, 0
    %p78 = por %p76, %p77
    %p79 = scmp.ne.s32.totalorder %s67, %s68
    %p80 = scmp.eq.s32.totalorder %s16, 3
    %p81 = por %p79, %p80
    %p83 = scmp.ne.s32.totalorder %s68, %s82
    %p84 = scmp.eq.s32.totalorder %s16, 0
    %p85 = por %p83, %p84
    %s87 = sadd.s32 %s86, 1
    %p90 = scmp.eq.s32.totalorder %s10, 3
    %p91 = scmp.ne.s32.totalorder %s86, %s88
    %p92 = scmp.eq.s32.totalorder %s10, 0
    %p93 = por %p91, %p92
    %p94 = scmp.ne.s32.totalorder %s86, %s88
    %p95 = scmp.eq.s32.totalorder %s15, 3
    %p96 = por %p94, %p95
    %p97 = scmp.ne.s32.totalorder %s88, %s89
    %p98 = scmp.eq.s32.totalorder %s15, 0
    %p99 = por %p97, %p98
    %p100 = scmp.ne.s32.totalorder %s88, %s89
    %p101 = scmp.eq.s32.totalorder %s16, 3
    %p102 = por %p100, %p101
    %p104 = scmp.ne.s32.totalorder %s89, %s103
    %p105 = scmp.eq.s32.totalorder %s16, 0
    %p106 = por %p104, %p105
    %s107 = ssub.s32 %s10, %s17
    %p108 = scmp.eq.s32.totalorder %s107, 0
    %s110 = sadd.s32 %s109, 1
    %s111 = scalar_select %p108, %s109, %s110
    %p114 = pneg %p108
    %p115 = scmp.eq.s32.totalorder %s10, 3
    %p116 = por %p114, %p115
    %p117 = scmp.ne.s32.totalorder %s109, %s112
    %p118 = scmp.eq.s32.totalorder %s10, 0
    %p119 = por %p117, %p118
    %p120 = scmp.ne.s32.totalorder %s109, %s112
    %p121 = scmp.eq.s32.totalorder %s15, 3
    %p122 = por %p120, %p121
    %p123 = scmp.ne.s32.totalorder %s112, %s113
    %p124 = scmp.eq.s32.totalorder %s15, 0
    %p125 = por %p123, %p124
    %p126 = scmp.ne.s32.totalorder %s112, %s113
    %p127 = scmp.eq.s32.totalorder %s16, 3
    %p128 = por %p126, %p127
    %p130 = scmp.ne.s32.totalorder %s113, %s129
    %p131 = scmp.eq.s32.totalorder %s16, 0
    %p132 = por %p130, %p131
    %p133 = scmp.le.s32.totalorder 1, %s10
    %p134 = scmp.lt.s32.totalorder %s10, 5
    %p135 = pnand %p133, %p134
    %p136 = pneg %p135
    // Predicated region
    $region9: #{tpu_custom_call.1} parent=5 // pred_check
      _
    $region10: #{tpu_custom_call.1} parent=5 // pred_check_branch
      %138 = sbr.rel (%p135) target = $region12
    $region11: #{tpu_custom_call.1} parent=5 // pred_region
      %s139 = ssub.s32 %s10, 1
      // Predicated region
      $region13: #{tpu_custom_call.1} parent=11 // pred_check
        %p140 = pneg %p57
      $region14: #{tpu_custom_call.1} parent=11 // pred_check_branch
        %142 = sbr.rel (%p140) target = $region16
      $region15: #{tpu_custom_call.1} parent=11 // pred_region
        _
      $region16: #{tpu_custom_call.1} parent=11 // pred_fallthru
        _
      // Predicated region
      $region17: #{tpu_custom_call.1} parent=11 // pred_check
        %p143 = pneg %p78
      $region18: #{tpu_custom_call.1} parent=11 // pred_check_branch
        %145 = sbr.rel (%p143) target = $region20
      $region19: #{tpu_custom_call.1} parent=11 // pred_region
        _
      $region20: #{tpu_custom_call.1} parent=11 // pred_fallthru
        _
      // Predicated region
      $region21: #{tpu_custom_call.1} parent=11 // pred_check
        %p146 = pneg %p99
      $region22: #{tpu_custom_call.1} parent=11 // pred_check_branch
        %148 = sbr.rel (%p146) target = $region24
      $region23: #{tpu_custom_call.1} parent=11 // pred_region
        _
      $region24: #{tpu_custom_call.1} parent=11 // pred_fallthru
        _
    $region12: #{tpu_custom_call.1} parent=5 // pred_fallthru
      _
    %p149 = scmp.lt.s32.totalorder %s10, 4
    // Predicated region
    $region25: #{tpu_custom_call.1} parent=5 // pred_check
      %p150 = pneg %p149
    $region26: #{tpu_custom_call.1} parent=5 // pred_check_branch
      %152 = sbr.rel (%p150) target = $region28
    $region27: #{tpu_custom_call.1} parent=5 // pred_region
      // Predicated region
      $region29: #{tpu_custom_call.1} parent=27 // pred_check
        %p153 = pneg %p30
      $region30: #{tpu_custom_call.1} parent=27 // pred_check_branch
        %155 = sbr.rel (%p153) target = $region32
      $region31: #{tpu_custom_call.1} parent=27 // pred_region
        %s156 = smul.u32 64, %s10
        %p157 = scmp.lt.s32.totalorder %s156, 255
        %s158 = scalar_select %p157, %s156, 255
        %s159 = smul.addr %s158, 4
        %s160 = scalar_lea.vmem %s0, %s159
        %s161 = smul.u32 64, %s10
      $region32: #{tpu_custom_call.1} parent=27 // pred_fallthru
        _
    $region28: #{tpu_custom_call.1} parent=5 // pred_fallthru
      _
    %p162 = scmp.le.s32.totalorder 1, %s10
    %p163 = scmp.lt.s32.totalorder %s10, 5
    %p164 = pnand %p162, %p163
    %p165 = pneg %p164
    // Predicated region
    $region33: #{tpu_custom_call.1} parent=5 // pred_check
      _
    $region34: #{tpu_custom_call.1} parent=5 // pred_check_branch
      %167 = sbr.rel (%p164) target = $region36
    $region35: #{tpu_custom_call.1} parent=5 // pred_region
      %s168 = ssub.s32 %s10, 1
      %s169 = smul.u32 64, %s15
      %p170 = scmp.lt.s32.totalorder %s169, 255
      %s171 = scalar_select %p170, %s169, 255
      %s172 = smul.addr %s171, 4
      %s173 = scalar_lea.vmem %s0, %s172
      %p174 = pneg %p36
      %p175 = pneg %p33
      %p176 = pneg %p57
      %p177 = pneg %p54
      %p178 = pneg %p78
      %p179 = pneg %p75
      %p180 = pneg %p99
      %p181 = pneg %p96
      %p182 = pneg %p125
      %p183 = pneg %p122
      %s184 = smul.u32 64, %s15
      %p185 = scmp.lt.s32.totalorder %s184, 255
      %s186 = scalar_select %p185, %s184, 255
      %s187 = smul.addr %s186, 4
      %s188 = scalar_lea.vmem %s4, %s187
      %s189 = smul.u32 64, %s15
      %p190 = scmp.lt.s32.totalorder %s189, 255
      %s191 = scalar_select %p190, %s189, 255
      %s192 = smul.addr %s191, 4
      %s193 = scalar_lea.vmem %s0, %s192
      %s194 = smul.u32 64, %s15
      %s195 = smul.u32 64, %s15
      %p196 = scmp.lt.s32.totalorder %s195, 255
      %s197 = scalar_select %p196, %s195, 255
      %s198 = smul.addr %s197, 4
      %s199 = scalar_lea.vmem %s4, %s198
      %s200 = smul.u32 64, %s15
      %v202 = vld [vmem:[%s193] sm:$0xf]
      %v203 = vld [vmem:[%s193 + $0x4] sm:$0xf]
      %v204 = vld [vmem:[%s193 + $0x8] sm:$0xf]
      %v205 = vld [vmem:[%s193 + $0xc] sm:$0xf]
      %v206 = vld [vmem:[%s193 + $0x10] sm:$0xf]
      %v207 = vld [vmem:[%s193 + $0x14] sm:$0xf]
      %v208 = vld [vmem:[%s193 + $0x18] sm:$0xf]
      %v209 = vld [vmem:[%s193 + $0x1c] sm:$0xf]
      %v210 = vld [vmem:[%s193 + $0x20] sm:$0xf]
      %v211 = vld [vmem:[%s193 + $0x24] sm:$0xf]
      %v212 = vld [vmem:[%s193 + $0x28] sm:$0xf]
      %v213 = vld [vmem:[%s193 + $0x2c] sm:$0xf]
      %v214 = vld [vmem:[%s193 + $0x30] sm:$0xf]
      %v215 = vld [vmem:[%s193 + $0x34] sm:$0xf]
      %v216 = vld [vmem:[%s193 + $0x38] sm:$0xf]
      %v217 = vld [vmem:[%s193 + $0x3c] sm:$0xf]
      %v218 = vld [vmem:[%s193 + $0x40] sm:$0xf]
      %v219 = vld [vmem:[%s193 + $0x44] sm:$0xf]
      %v220 = vld [vmem:[%s193 + $0x48] sm:$0xf]
      %v221 = vld [vmem:[%s193 + $0x4c] sm:$0xf]
      %v222 = vld [vmem:[%s193 + $0x50] sm:$0xf]
      %v223 = vld [vmem:[%s193 + $0x54] sm:$0xf]
      %v224 = vld [vmem:[%s193 + $0x58] sm:$0xf]
      %v225 = vld [vmem:[%s193 + $0x5c] sm:$0xf]
      %v226 = vld [vmem:[%s193 + $0x60] sm:$0xf]
      %v227 = vld [vmem:[%s193 + $0x64] sm:$0xf]
      %v228 = vld [vmem:[%s193 + $0x68] sm:$0xf]
      %v229 = vld [vmem:[%s193 + $0x6c] sm:$0xf]
      %v230 = vld [vmem:[%s193 + $0x70] sm:$0xf]
      %v231 = vld [vmem:[%s193 + $0x74] sm:$0xf]
      %v232 = vld [vmem:[%s193 + $0x78] sm:$0xf]
      %v233 = vld [vmem:[%s193 + $0x7c] sm:$0xf]
      %v234 = vld [vmem:[%s193 + $0x80] sm:$0xf]
      %v235 = vld [vmem:[%s193 + $0x84] sm:$0xf]
      %v236 = vld [vmem:[%s193 + $0x88] sm:$0xf]
      %v237 = vld [vmem:[%s193 + $0x8c] sm:$0xf]
      %v238 = vld [vmem:[%s193 + $0x90] sm:$0xf]
      %v239 = vld [vmem:[%s193 + $0x94] sm:$0xf]
      %v240 = vld [vmem:[%s193 + $0x98] sm:$0xf]
      %v241 = vld [vmem:[%s193 + $0x9c] sm:$0xf]
      %v242 = vld [vmem:[%s193 + $0xa0] sm:$0xf]
      %v243 = vld [vmem:[%s193 + $0xa4] sm:$0xf]
      %v244 = vld [vmem:[%s193 + $0xa8] sm:$0xf]
      %v245 = vld [vmem:[%s193 + $0xac] sm:$0xf]
      %v246 = vld [vmem:[%s193 + $0xb0] sm:$0xf]
      %v247 = vld [vmem:[%s193 + $0xb4] sm:$0xf]
      %v248 = vld [vmem:[%s193 + $0xb8] sm:$0xf]
      %v249 = vld [vmem:[%s193 + $0xbc] sm:$0xf]
      %v250 = vld [vmem:[%s193 + $0xc0] sm:$0xf]
      %v251 = vld [vmem:[%s193 + $0xc4] sm:$0xf]
      %v252 = vld [vmem:[%s193 + $0xc8] sm:$0xf]
      %v253 = vld [vmem:[%s193 + $0xcc] sm:$0xf]
      %v254 = vld [vmem:[%s193 + $0xd0] sm:$0xf]
      %v255 = vld [vmem:[%s193 + $0xd4] sm:$0xf]
      %v256 = vld [vmem:[%s193 + $0xd8] sm:$0xf]
      %v257 = vld [vmem:[%s193 + $0xdc] sm:$0xf]
      %v258 = vld [vmem:[%s193 + $0xe0] sm:$0xf]
      %v259 = vld [vmem:[%s193 + $0xe4] sm:$0xf]
      %v260 = vld [vmem:[%s193 + $0xe8] sm:$0xf]
      %v261 = vld [vmem:[%s193 + $0xec] sm:$0xf]
      %v262 = vld [vmem:[%s193 + $0xf0] sm:$0xf]
      %v263 = vld [vmem:[%s193 + $0xf4] sm:$0xf]
      %v264 = vld [vmem:[%s193 + $0xf8] sm:$0xf]
      %v265 = vld [vmem:[%s193 + $0xfc] sm:$0xf]
      %v266 = vld [vmem:[%s1] sm:$0xf]
      %v267 = vld [vmem:[%s1 + $0x4] sm:$0xf]
      %v268 = vld [vmem:[%s1 + $0x8] sm:$0xf]
      %v269 = vld [vmem:[%s1 + $0xc] sm:$0xf]
      %v270 = vld [vmem:[%s1 + $0x10] sm:$0xf]
      %v271 = vld [vmem:[%s1 + $0x14] sm:$0xf]
      %v272 = vld [vmem:[%s1 + $0x18] sm:$0xf]
      %v273 = vld [vmem:[%s1 + $0x1c] sm:$0xf]
      %v338 = vunpack.c.l.b16 %v202
      %v339 = vunpack.c.l.b16 %v203
      %v340 = vunpack.c.l.b16 %v204
      %v341 = vunpack.c.l.b16 %v205
      %v342 = vunpack.c.l.b16 %v206
      %v343 = vunpack.c.l.b16 %v207
      %v344 = vunpack.c.l.b16 %v208
      %v345 = vunpack.c.l.b16 %v209
      %v346 = vunpack.c.l.b16 %v210
      %v347 = vunpack.c.l.b16 %v211
      %v348 = vunpack.c.l.b16 %v212
      %v349 = vunpack.c.l.b16 %v213
      %v350 = vunpack.c.l.b16 %v214
      %v351 = vunpack.c.l.b16 %v215
      %v352 = vunpack.c.l.b16 %v216
      %v353 = vunpack.c.l.b16 %v217
      %v354 = vunpack.c.l.b16 %v218
      %v355 = vunpack.c.l.b16 %v219
      %v356 = vunpack.c.l.b16 %v220
      %v357 = vunpack.c.l.b16 %v221
      %v358 = vunpack.c.l.b16 %v222
      %v359 = vunpack.c.l.b16 %v223
      %v360 = vunpack.c.l.b16 %v224
      %v361 = vunpack.c.l.b16 %v225
      %v362 = vunpack.c.l.b16 %v226
      %v363 = vunpack.c.l.b16 %v227
      %v364 = vunpack.c.l.b16 %v228
      %v365 = vunpack.c.l.b16 %v229
      %v366 = vunpack.c.l.b16 %v230
      %v367 = vunpack.c.l.b16 %v231
      %v368 = vunpack.c.l.b16 %v232
      %v369 = vunpack.c.l.b16 %v233
      %v370 = vunpack.c.l.b16 %v234
      %v371 = vunpack.c.l.b16 %v235
      %v372 = vunpack.c.l.b16 %v236
      %v373 = vunpack.c.l.b16 %v237
      %v374 = vunpack.c.l.b16 %v238
      %v375 = vunpack.c.l.b16 %v239
      %v376 = vunpack.c.l.b16 %v240
      %v377 = vunpack.c.l.b16 %v241
      %v378 = vunpack.c.l.b16 %v242
      %v379 = vunpack.c.l.b16 %v243
      %v380 = vunpack.c.l.b16 %v244
      %v381 = vunpack.c.l.b16 %v245
      %v382 = vunpack.c.l.b16 %v246
      %v383 = vunpack.c.l.b16 %v247
      %v384 = vunpack.c.l.b16 %v248
      %v385 = vunpack.c.l.b16 %v249
      %v386 = vunpack.c.l.b16 %v250
      %v387 = vunpack.c.l.b16 %v251
      %v388 = vunpack.c.l.b16 %v252
      %v389 = vunpack.c.l.b16 %v253
      %v390 = vunpack.c.l.b16 %v254
      %v391 = vunpack.c.l.b16 %v255
      %v392 = vunpack.c.l.b16 %v256
      %v393 = vunpack.c.l.b16 %v257
      %v394 = vunpack.c.l.b16 %v258
      %v395 = vunpack.c.l.b16 %v259
      %v396 = vunpack.c.l.b16 %v260
      %v397 = vunpack.c.l.b16 %v261
      %v398 = vunpack.c.l.b16 %v262
      %v399 = vunpack.c.l.b16 %v263
      %v400 = vunpack.c.l.b16 %v264
      %v401 = vunpack.c.l.b16 %v265
      %v402 = vpack.c.b16 %v339, %v338
      %v403 = vpack.c.b16 %v341, %v340
      %v404 = vpack.c.b16 %v343, %v342
      %v405 = vpack.c.b16 %v345, %v344
      %v406 = vpack.c.b16 %v347, %v346
      %v407 = vpack.c.b16 %v349, %v348
      %v408 = vpack.c.b16 %v351, %v350
      %v409 = vpack.c.b16 %v353, %v352
      %v410 = vpack.c.b16 %v355, %v354
      %v411 = vpack.c.b16 %v357, %v356
      %v412 = vpack.c.b16 %v359, %v358
      %v413 = vpack.c.b16 %v361, %v360
      %v414 = vpack.c.b16 %v363, %v362
      %v415 = vpack.c.b16 %v365, %v364
      %v416 = vpack.c.b16 %v367, %v366
      %v417 = vpack.c.b16 %v369, %v368
      %v418 = vpack.c.b16 %v371, %v370
      %v419 = vpack.c.b16 %v373, %v372
      %v420 = vpack.c.b16 %v375, %v374
      %v421 = vpack.c.b16 %v377, %v376
      %v422 = vpack.c.b16 %v379, %v378
      %v423 = vpack.c.b16 %v381, %v380
      %v424 = vpack.c.b16 %v383, %v382
      %v425 = vpack.c.b16 %v385, %v384
      %v426 = vpack.c.b16 %v387, %v386
      %v427 = vpack.c.b16 %v389, %v388
      %v428 = vpack.c.b16 %v391, %v390
      %v429 = vpack.c.b16 %v393, %v392
      %v430 = vpack.c.b16 %v395, %v394
      %v431 = vpack.c.b16 %v397, %v396
      %v432 = vpack.c.b16 %v399, %v398
      %v433 = vpack.c.b16 %v401, %v400
      %v442 = vunpack.c.l.b16 %v266
      %v443 = vunpack.c.l.b16 %v267
      %v444 = vunpack.c.l.b16 %v268
      %v445 = vunpack.c.l.b16 %v269
      %v446 = vunpack.c.l.b16 %v270
      %v447 = vunpack.c.l.b16 %v271
      %v448 = vunpack.c.l.b16 %v272
      %v449 = vunpack.c.l.b16 %v273
      %v450 = vpack.c.b16 %v443, %v442
      %v451 = vpack.c.b16 %v445, %v444
      %v452 = vpack.c.b16 %v447, %v446
      %v453 = vpack.c.b16 %v449, %v448
      %vm458 = vcmask 523264
      %v460 = vsel %vm458, %v402, 0
      %v463 = vsel %vm458, %v403, 0
      %v466 = vsel %vm458, %v404, 0
      %v469 = vsel %vm458, %v405, 0
      %v472 = vsel %vm458, %v406, 0
      %v475 = vsel %vm458, %v407, 0
      %v478 = vsel %vm458, %v408, 0
      %v481 = vsel %vm458, %v409, 0
      %v484 = vsel %vm458, %v410, 0
      %v487 = vsel %vm458, %v411, 0
      %v490 = vsel %vm458, %v412, 0
      %v493 = vsel %vm458, %v413, 0
      %v496 = vsel %vm458, %v414, 0
      %v499 = vsel %vm458, %v415, 0
      %v502 = vsel %vm458, %v416, 0
      %v505 = vsel %vm458, %v417, 0
      %v508 = vsel %vm458, %v418, 0
      %v511 = vsel %vm458, %v419, 0
      %v514 = vsel %vm458, %v420, 0
      %v517 = vsel %vm458, %v421, 0
      %v520 = vsel %vm458, %v422, 0
      %v523 = vsel %vm458, %v423, 0
      %v526 = vsel %vm458, %v424, 0
      %v529 = vsel %vm458, %v425, 0
      %v532 = vsel %vm458, %v426, 0
      %v535 = vsel %vm458, %v427, 0
      %v538 = vsel %vm458, %v428, 0
      %v541 = vsel %vm458, %v429, 0
      %v544 = vsel %vm458, %v430, 0
      %v547 = vsel %vm458, %v431, 0
      %v550 = vsel %vm458, %v432, 0
      %v553 = vsel %vm458, %v433, 0
      %555 = vmatpush.bf16.msra.mxu0 0
      %556 = vmatpush.bf16.msra.mxu0 0
      %557 = vmatpush.bf16.msra.mxu0 0
      %558 = vmatpush.bf16.msra.mxu0 0
      %559 = vmatpush.bf16.msra.mxu0 %v453
      %560 = vmatpush.bf16.msra.mxu0 %v452
      %561 = vmatpush.bf16.msra.mxu0 %v451
      %562 = vmatpush.bf16.msra.mxu0 %v450
      %563 = vmatmul.bf16.gmra.mxu0 %v460
      %v564 = vpop.f32.mrf.mxu0
      %v565 = vadd.f32 0.0, %v564
      %v566 = vpop.f32.mrf.mxu0
      %v567 = vadd.f32 0.0, %v566
      %568 = vmatmul.bf16.gmra.mxu0 %v463
      %v569 = vpop.f32.mrf.mxu0
      %v570 = vadd.f32 0.0, %v569
      %v571 = vpop.f32.mrf.mxu0
      %v572 = vadd.f32 0.0, %v571
      %573 = vmatmul.bf16.gmra.mxu0 %v466
      %v574 = vpop.f32.mrf.mxu0
      %v575 = vadd.f32 0.0, %v574
      %v576 = vpop.f32.mrf.mxu0
      %v577 = vadd.f32 0.0, %v576
      %578 = vmatmul.bf16.gmra.mxu0 %v469
      %v579 = vpop.f32.mrf.mxu0
      %v580 = vadd.f32 0.0, %v579
      %v581 = vpop.f32.mrf.mxu0
      %v582 = vadd.f32 0.0, %v581
      %583 = vmatmul.bf16.gmra.mxu0 %v472
      %v584 = vpop.f32.mrf.mxu0
      %v585 = vadd.f32 0.0, %v584
      %v586 = vpop.f32.mrf.mxu0
      %v587 = vadd.f32 0.0, %v586
      %588 = vmatmul.bf16.gmra.mxu0 %v475
      %v589 = vpop.f32.mrf.mxu0
      %v590 = vadd.f32 0.0, %v589
      %v591 = vpop.f32.mrf.mxu0
      %v592 = vadd.f32 0.0, %v591
      %593 = vmatmul.bf16.gmra.mxu0 %v478
      %v594 = vpop.f32.mrf.mxu0
      %v595 = vadd.f32 0.0, %v594
      %v596 = vpop.f32.mrf.mxu0
      %v597 = vadd.f32 0.0, %v596
      %598 = vmatmul.bf16.gmra.mxu0 %v481
      %v599 = vpop.f32.mrf.mxu0
      %v600 = vadd.f32 0.0, %v599
      %v601 = vpop.f32.mrf.mxu0
      %v602 = vadd.f32 0.0, %v601
      %603 = vmatmul.bf16.gmra.mxu0 %v484
      %v604 = vpop.f32.mrf.mxu0
      %v605 = vadd.f32 0.0, %v604
      %v606 = vpop.f32.mrf.mxu0
      %v607 = vadd.f32 0.0, %v606
      %608 = vmatmul.bf16.gmra.mxu0 %v487
      %v609 = vpop.f32.mrf.mxu0
      %v610 = vadd.f32 0.0, %v609
      %v611 = vpop.f32.mrf.mxu0
      %v612 = vadd.f32 0.0, %v611
      %613 = vmatmul.bf16.gmra.mxu0 %v490
      %v614 = vpop.f32.mrf.mxu0
      %v615 = vadd.f32 0.0, %v614
      %v616 = vpop.f32.mrf.mxu0
      %v617 = vadd.f32 0.0, %v616
      %618 = vmatmul.bf16.gmra.mxu0 %v493
      %v619 = vpop.f32.mrf.mxu0
      %v620 = vadd.f32 0.0, %v619
      %v621 = vpop.f32.mrf.mxu0
      %v622 = vadd.f32 0.0, %v621
      %623 = vmatmul.bf16.gmra.mxu0 %v496
      %v624 = vpop.f32.mrf.mxu0
      %v625 = vadd.f32 0.0, %v624
      %v626 = vpop.f32.mrf.mxu0
      %v627 = vadd.f32 0.0, %v626
      %628 = vmatmul.bf16.gmra.mxu0 %v499
      %v629 = vpop.f32.mrf.mxu0
      %v630 = vadd.f32 0.0, %v629
      %v631 = vpop.f32.mrf.mxu0
      %v632 = vadd.f32 0.0, %v631
      %633 = vmatmul.bf16.gmra.mxu0 %v502
      %v634 = vpop.f32.mrf.mxu0
      %v635 = vadd.f32 0.0, %v634
      %v636 = vpop.f32.mrf.mxu0
      %v637 = vadd.f32 0.0, %v636
      %638 = vmatmul.bf16.gmra.mxu0 %v505
      %v639 = vpop.f32.mrf.mxu0
      %v640 = vadd.f32 0.0, %v639
      %v641 = vpop.f32.mrf.mxu0
      %v642 = vadd.f32 0.0, %v641
      %643 = vmatmul.bf16.gmra.mxu0 %v508
      %v644 = vpop.f32.mrf.mxu0
      %v645 = vadd.f32 0.0, %v644
      %v646 = vpop.f32.mrf.mxu0
      %v647 = vadd.f32 0.0, %v646
      %648 = vmatmul.bf16.gmra.mxu0 %v511
      %v649 = vpop.f32.mrf.mxu0
      %v650 = vadd.f32 0.0, %v649
      %v651 = vpop.f32.mrf.mxu0
      %v652 = vadd.f32 0.0, %v651
      %653 = vmatmul.bf16.gmra.mxu0 %v514
      %v654 = vpop.f32.mrf.mxu0
      %v655 = vadd.f32 0.0, %v654
      %v656 = vpop.f32.mrf.mxu0
      %v657 = vadd.f32 0.0, %v656
      %658 = vmatmul.bf16.gmra.mxu0 %v517
      %v659 = vpop.f32.mrf.mxu0
      %v660 = vadd.f32 0.0, %v659
      %v661 = vpop.f32.mrf.mxu0
      %v662 = vadd.f32 0.0, %v661
      %663 = vmatmul.bf16.gmra.mxu0 %v520
      %v664 = vpop.f32.mrf.mxu0
      %v665 = vadd.f32 0.0, %v664
      %v666 = vpop.f32.mrf.mxu0
      %v667 = vadd.f32 0.0, %v666
      %668 = vmatmul.bf16.gmra.mxu0 %v523
      %v669 = vpop.f32.mrf.mxu0
      %v670 = vadd.f32 0.0, %v669
      %v671 = vpop.f32.mrf.mxu0
      %v672 = vadd.f32 0.0, %v671
      %673 = vmatmul.bf16.gmra.mxu0 %v526
      %v674 = vpop.f32.mrf.mxu0
      %v675 = vadd.f32 0.0, %v674
      %v676 = vpop.f32.mrf.mxu0
      %v677 = vadd.f32 0.0, %v676
      %678 = vmatmul.bf16.gmra.mxu0 %v529
      %v679 = vpop.f32.mrf.mxu0
      %v680 = vadd.f32 0.0, %v679
      %v681 = vpop.f32.mrf.mxu0
      %v682 = vadd.f32 0.0, %v681
      %683 = vmatmul.bf16.gmra.mxu0 %v532
      %v684 = vpop.f32.mrf.mxu0
      %v685 = vadd.f32 0.0, %v684
      %v686 = vpop.f32.mrf.mxu0
      %v687 = vadd.f32 0.0, %v686
      %688 = vmatmul.bf16.gmra.mxu0 %v535
      %v689 = vpop.f32.mrf.mxu0
      %v690 = vadd.f32 0.0, %v689
      %v691 = vpop.f32.mrf.mxu0
      %v692 = vadd.f32 0.0, %v691
      %693 = vmatmul.bf16.gmra.mxu0 %v538
      %v694 = vpop.f32.mrf.mxu0
      %v695 = vadd.f32 0.0, %v694
      %v696 = vpop.f32.mrf.mxu0
      %v697 = vadd.f32 0.0, %v696
      %698 = vmatmul.bf16.gmra.mxu0 %v541
      %v699 = vpop.f32.mrf.mxu0
      %v700 = vadd.f32 0.0, %v699
      %v701 = vpop.f32.mrf.mxu0
      %v702 = vadd.f32 0.0, %v701
      %703 = vmatmul.bf16.gmra.mxu0 %v544
      %v704 = vpop.f32.mrf.mxu0
      %v705 = vadd.f32 0.0, %v704
      %v706 = vpop.f32.mrf.mxu0
      %v707 = vadd.f32 0.0, %v706
      %708 = vmatmul.bf16.gmra.mxu0 %v547
      %v709 = vpop.f32.mrf.mxu0
      %v710 = vadd.f32 0.0, %v709
      %v711 = vpop.f32.mrf.mxu0
      %v712 = vadd.f32 0.0, %v711
      %713 = vmatmul.bf16.gmra.mxu0 %v550
      %v714 = vpop.f32.mrf.mxu0
      %v715 = vadd.f32 0.0, %v714
      %v716 = vpop.f32.mrf.mxu0
      %v717 = vadd.f32 0.0, %v716
      %718 = vmatmul.bf16.gmra.mxu0 %v553
      %v719 = vpop.f32.mrf.mxu0
      %v720 = vadd.f32 0.0, %v719
      %v721 = vpop.f32.mrf.mxu0
      %v722 = vadd.f32 0.0, %v721
      %723 = vdwg.mxu0
      %v724 = vld [vmem:[%s2] sm:$0x1]
      %v726 = vperm.slane %v724, 0
      %v728 = vmul.f32 %v565, %v726
      %v729 = vmul.f32 %v567, %v726
      %v730 = vmul.f32 %v570, %v726
      %v731 = vmul.f32 %v572, %v726
      %v732 = vmul.f32 %v575, %v726
      %v733 = vmul.f32 %v577, %v726
      %v734 = vmul.f32 %v580, %v726
      %v735 = vmul.f32 %v582, %v726
      %v736 = vmul.f32 %v585, %v726
      %v737 = vmul.f32 %v587, %v726
      %v738 = vmul.f32 %v590, %v726
      %v739 = vmul.f32 %v592, %v726
      %v740 = vmul.f32 %v595, %v726
      %v741 = vmul.f32 %v597, %v726
      %v742 = vmul.f32 %v600, %v726
      %v743 = vmul.f32 %v602, %v726
      %v744 = vmul.f32 %v605, %v726
      %v745 = vmul.f32 %v607, %v726
      %v746 = vmul.f32 %v610, %v726
      %v747 = vmul.f32 %v612, %v726
      %v748 = vmul.f32 %v615, %v726
      %v749 = vmul.f32 %v617, %v726
      %v750 = vmul.f32 %v620, %v726
      %v751 = vmul.f32 %v622, %v726
      %v752 = vmul.f32 %v625, %v726
      %v753 = vmul.f32 %v627, %v726
      %v754 = vmul.f32 %v630, %v726
      %v755 = vmul.f32 %v632, %v726
      %v756 = vmul.f32 %v635, %v726
      %v757 = vmul.f32 %v637, %v726
      %v758 = vmul.f32 %v640, %v726
      %v759 = vmul.f32 %v642, %v726
      %v760 = vmul.f32 %v645, %v726
      %v761 = vmul.f32 %v647, %v726
      %v762 = vmul.f32 %v650, %v726
      %v763 = vmul.f32 %v652, %v726
      %v764 = vmul.f32 %v655, %v726
      %v765 = vmul.f32 %v657, %v726
      %v766 = vmul.f32 %v660, %v726
      %v767 = vmul.f32 %v662, %v726
      %v768 = vmul.f32 %v665, %v726
      %v769 = vmul.f32 %v667, %v726
      %v770 = vmul.f32 %v670, %v726
      %v771 = vmul.f32 %v672, %v726
      %v772 = vmul.f32 %v675, %v726
      %v773 = vmul.f32 %v677, %v726
      %v774 = vmul.f32 %v680, %v726
      %v775 = vmul.f32 %v682, %v726
      %v776 = vmul.f32 %v685, %v726
      %v777 = vmul.f32 %v687, %v726
      %v778 = vmul.f32 %v690, %v726
      %v779 = vmul.f32 %v692, %v726
      %v780 = vmul.f32 %v695, %v726
      %v781 = vmul.f32 %v697, %v726
      %v782 = vmul.f32 %v700, %v726
      %v783 = vmul.f32 %v702, %v726
      %v784 = vmul.f32 %v705, %v726
      %v785 = vmul.f32 %v707, %v726
      %v786 = vmul.f32 %v710, %v726
      %v787 = vmul.f32 %v712, %v726
      %v788 = vmul.f32 %v715, %v726
      %v789 = vmul.f32 %v717, %v726
      %v790 = vmul.f32 %v720, %v726
      %v791 = vmul.f32 %v722, %v726
      %v792 = vld [vmem:[%s3] sm:$0x1]
      %v794 = vperm.slane %v792, 0
      %v796 = vadd.f32 %v728, %v794
      %v797 = vadd.f32 %v729, %v794
      %v798 = vadd.f32 %v730, %v794
      %v799 = vadd.f32 %v731, %v794
      %v800 = vadd.f32 %v732, %v794
      %v801 = vadd.f32 %v733, %v794
      %v802 = vadd.f32 %v734, %v794
      %v803 = vadd.f32 %v735, %v794
      %v804 = vadd.f32 %v736, %v794
      %v805 = vadd.f32 %v737, %v794
      %v806 = vadd.f32 %v738, %v794
      %v807 = vadd.f32 %v739, %v794
      %v808 = vadd.f32 %v740, %v794
      %v809 = vadd.f32 %v741, %v794
      %v810 = vadd.f32 %v742, %v794
      %v811 = vadd.f32 %v743, %v794
      %v812 = vadd.f32 %v744, %v794
      %v813 = vadd.f32 %v745, %v794
      %v814 = vadd.f32 %v746, %v794
      %v815 = vadd.f32 %v747, %v794
      %v816 = vadd.f32 %v748, %v794
      %v817 = vadd.f32 %v749, %v794
      %v818 = vadd.f32 %v750, %v794
      %v819 = vadd.f32 %v751, %v794
      %v820 = vadd.f32 %v752, %v794
      %v821 = vadd.f32 %v753, %v794
      %v822 = vadd.f32 %v754, %v794
      %v823 = vadd.f32 %v755, %v794
      %v824 = vadd.f32 %v756, %v794
      %v825 = vadd.f32 %v757, %v794
      %v826 = vadd.f32 %v758, %v794
      %v827 = vadd.f32 %v759, %v794
      %v828 = vadd.f32 %v760, %v794
      %v829 = vadd.f32 %v761, %v794
      %v830 = vadd.f32 %v762, %v794
      %v831 = vadd.f32 %v763, %v794
      %v832 = vadd.f32 %v764, %v794
      %v833 = vadd.f32 %v765, %v794
      %v834 = vadd.f32 %v766, %v794
      %v835 = vadd.f32 %v767, %v794
      %v836 = vadd.f32 %v768, %v794
      %v837 = vadd.f32 %v769, %v794
      %v838 = vadd.f32 %v770, %v794
      %v839 = vadd.f32 %v771, %v794
      %v840 = vadd.f32 %v772, %v794
      %v841 = vadd.f32 %v773, %v794
      %v842 = vadd.f32 %v774, %v794
      %v843 = vadd.f32 %v775, %v794
      %v844 = vadd.f32 %v776, %v794
      %v845 = vadd.f32 %v777, %v794
      %v846 = vadd.f32 %v778, %v794
      %v847 = vadd.f32 %v779, %v794
      %v848 = vadd.f32 %v780, %v794
      %v849 = vadd.f32 %v781, %v794
      %v850 = vadd.f32 %v782, %v794
      %v851 = vadd.f32 %v783, %v794
      %v852 = vadd.f32 %v784, %v794
      %v853 = vadd.f32 %v785, %v794
      %v854 = vadd.f32 %v786, %v794
      %v855 = vadd.f32 %v787, %v794
      %v856 = vadd.f32 %v788, %v794
      %v857 = vadd.f32 %v789, %v794
      %v858 = vadd.f32 %v790, %v794
      %v859 = vadd.f32 %v791, %v794
      %v860 = vmul.f32 %v796, 0.2
      %v861 = vmul.f32 %v797, 0.2
      %v862 = vmul.f32 %v798, 0.2
      %v863 = vmul.f32 %v799, 0.2
      %v864 = vmul.f32 %v800, 0.2
      %v865 = vmul.f32 %v801, 0.2
      %v866 = vmul.f32 %v802, 0.2
      %v867 = vmul.f32 %v803, 0.2
      %v868 = vmul.f32 %v804, 0.2
      %v869 = vmul.f32 %v805, 0.2
      %v870 = vmul.f32 %v806, 0.2
      %v871 = vmul.f32 %v807, 0.2
      %v872 = vmul.f32 %v808, 0.2
      %v873 = vmul.f32 %v809, 0.2
      %v874 = vmul.f32 %v810, 0.2
      %v875 = vmul.f32 %v811, 0.2
      %v876 = vmul.f32 %v812, 0.2
      %v877 = vmul.f32 %v813, 0.2
      %v878 = vmul.f32 %v814, 0.2
      %v879 = vmul.f32 %v815, 0.2
      %v880 = vmul.f32 %v816, 0.2
      %v881 = vmul.f32 %v817, 0.2
      %v882 = vmul.f32 %v818, 0.2
      %v883 = vmul.f32 %v819, 0.2
      %v884 = vmul.f32 %v820, 0.2
      %v885 = vmul.f32 %v821, 0.2
      %v886 = vmul.f32 %v822, 0.2
      %v887 = vmul.f32 %v823, 0.2
      %v888 = vmul.f32 %v824, 0.2
      %v889 = vmul.f32 %v825, 0.2
      %v890 = vmul.f32 %v826, 0.2
      %v891 = vmul.f32 %v827, 0.2
      %v892 = vmul.f32 %v828, 0.2
      %v893 = vmul.f32 %v829, 0.2
      %v894 = vmul.f32 %v830, 0.2
      %v895 = vmul.f32 %v831, 0.2
      %v896 = vmul.f32 %v832, 0.2
      %v897 = vmul.f32 %v833, 0.2
      %v898 = vmul.f32 %v834, 0.2
      %v899 = vmul.f32 %v835, 0.2
      %v900 = vmul.f32 %v836, 0.2
      %v901 = vmul.f32 %v837, 0.2
      %v902 = vmul.f32 %v838, 0.2
      %v903 = vmul.f32 %v839, 0.2
      %v904 = vmul.f32 %v840, 0.2
      %v905 = vmul.f32 %v841, 0.2
      %v906 = vmul.f32 %v842, 0.2
      %v907 = vmul.f32 %v843, 0.2
      %v908 = vmul.f32 %v844, 0.2
      %v909 = vmul.f32 %v845, 0.2
      %v910 = vmul.f32 %v846, 0.2
      %v911 = vmul.f32 %v847, 0.2
      %v912 = vmul.f32 %v848, 0.2
      %v913 = vmul.f32 %v849, 0.2
      %v914 = vmul.f32 %v850, 0.2
      %v915 = vmul.f32 %v851, 0.2
      %v916 = vmul.f32 %v852, 0.2
      %v917 = vmul.f32 %v853, 0.2
      %v918 = vmul.f32 %v854, 0.2
      %v919 = vmul.f32 %v855, 0.2
      %v920 = vmul.f32 %v856, 0.2
      %v921 = vmul.f32 %v857, 0.2
      %v922 = vmul.f32 %v858, 0.2
      %v923 = vmul.f32 %v859, 0.2
      %v924 = vmax.f32 %v796, %v860
      %v925 = vmax.f32 %v797, %v861
      %v926 = vmax.f32 %v798, %v862
      %v927 = vmax.f32 %v799, %v863
      %v928 = vmax.f32 %v800, %v864
      %v929 = vmax.f32 %v801, %v865
      %v930 = vmax.f32 %v802, %v866
      %v931 = vmax.f32 %v803, %v867
      %v932 = vmax.f32 %v804, %v868
      %v933 = vmax.f32 %v805, %v869
      %v934 = vmax.f32 %v806, %v870
      %v935 = vmax.f32 %v807, %v871
      %v936 = vmax.f32 %v808, %v872
      %v937 = vmax.f32 %v809, %v873
      %v938 = vmax.f32 %v810, %v874
      %v939 = vmax.f32 %v811, %v875
      %v940 = vmax.f32 %v812, %v876
      %v941 = vmax.f32 %v813, %v877
      %v942 = vmax.f32 %v814, %v878
      %v943 = vmax.f32 %v815, %v879
      %v944 = vmax.f32 %v816, %v880
      %v945 = vmax.f32 %v817, %v881
      %v946 = vmax.f32 %v818, %v882
      %v947 = vmax.f32 %v819, %v883
      %v948 = vmax.f32 %v820, %v884
      %v949 = vmax.f32 %v821, %v885
      %v950 = vmax.f32 %v822, %v886
      %v951 = vmax.f32 %v823, %v887
      %v952 = vmax.f32 %v824, %v888
      %v953 = vmax.f32 %v825, %v889
      %v954 = vmax.f32 %v826, %v890
      %v955 = vmax.f32 %v827, %v891
      %v956 = vmax.f32 %v828, %v892
      %v957 = vmax.f32 %v829, %v893
      %v958 = vmax.f32 %v830, %v894
      %v959 = vmax.f32 %v831, %v895
      %v960 = vmax.f32 %v832, %v896
      %v961 = vmax.f32 %v833, %v897
      %v962 = vmax.f32 %v834, %v898
      %v963 = vmax.f32 %v835, %v899
      %v964 = vmax.f32 %v836, %v900
      %v965 = vmax.f32 %v837, %v901
      %v966 = vmax.f32 %v838, %v902
      %v967 = vmax.f32 %v839, %v903
      %v968 = vmax.f32 %v840, %v904
      %v969 = vmax.f32 %v841, %v905
      %v970 = vmax.f32 %v842, %v906
      %v971 = vmax.f32 %v843, %v907
      %v972 = vmax.f32 %v844, %v908
      %v973 = vmax.f32 %v845, %v909
      %v974 = vmax.f32 %v846, %v910
      %v975 = vmax.f32 %v847, %v911
      %v976 = vmax.f32 %v848, %v912
      %v977 = vmax.f32 %v849, %v913
      %v978 = vmax.f32 %v850, %v914
      %v979 = vmax.f32 %v851, %v915
      %v980 = vmax.f32 %v852, %v916
      %v981 = vmax.f32 %v853, %v917
      %v982 = vmax.f32 %v854, %v918
      %v983 = vmax.f32 %v855, %v919
      %v984 = vmax.f32 %v856, %v920
      %v985 = vmax.f32 %v857, %v921
      %v986 = vmax.f32 %v858, %v922
      %v987 = vmax.f32 %v859, %v923
      %v988 = vpack.c.bf16 %v924, %v924
      %v989 = vpack.c.bf16 %v925, %v925
      %v990 = vpack.c.bf16 %v926, %v926
      %v991 = vpack.c.bf16 %v927, %v927
      %v992 = vpack.c.bf16 %v928, %v928
      %v993 = vpack.c.bf16 %v929, %v929
      %v994 = vpack.c.bf16 %v930, %v930
      %v995 = vpack.c.bf16 %v931, %v931
      %v996 = vpack.c.bf16 %v932, %v932
      %v997 = vpack.c.bf16 %v933, %v933
      %v998 = vpack.c.bf16 %v934, %v934
      %v999 = vpack.c.bf16 %v935, %v935
      %v1000 = vpack.c.bf16 %v936, %v936
      %v1001 = vpack.c.bf16 %v937, %v937
      %v1002 = vpack.c.bf16 %v938, %v938
      %v1003 = vpack.c.bf16 %v939, %v939
      %v1004 = vpack.c.bf16 %v940, %v940
      %v1005 = vpack.c.bf16 %v941, %v941
      %v1006 = vpack.c.bf16 %v942, %v942
      %v1007 = vpack.c.bf16 %v943, %v943
      %v1008 = vpack.c.bf16 %v944, %v944
      %v1009 = vpack.c.bf16 %v945, %v945
      %v1010 = vpack.c.bf16 %v946, %v946
      %v1011 = vpack.c.bf16 %v947, %v947
      %v1012 = vpack.c.bf16 %v948, %v948
      %v1013 = vpack.c.bf16 %v949, %v949
      %v1014 = vpack.c.bf16 %v950, %v950
      %v1015 = vpack.c.bf16 %v951, %v951
      %v1016 = vpack.c.bf16 %v952, %v952
      %v1017 = vpack.c.bf16 %v953, %v953
      %v1018 = vpack.c.bf16 %v954, %v954
      %v1019 = vpack.c.bf16 %v955, %v955
      %v1020 = vpack.c.bf16 %v956, %v956
      %v1021 = vpack.c.bf16 %v957, %v957
      %v1022 = vpack.c.bf16 %v958, %v958
      %v1023 = vpack.c.bf16 %v959, %v959
      %v1024 = vpack.c.bf16 %v960, %v960
      %v1025 = vpack.c.bf16 %v961, %v961
      %v1026 = vpack.c.bf16 %v962, %v962
      %v1027 = vpack.c.bf16 %v963, %v963
      %v1028 = vpack.c.bf16 %v964, %v964
      %v1029 = vpack.c.bf16 %v965, %v965
      %v1030 = vpack.c.bf16 %v966, %v966
      %v1031 = vpack.c.bf16 %v967, %v967
      %v1032 = vpack.c.bf16 %v968, %v968
      %v1033 = vpack.c.bf16 %v969, %v969
      %v1034 = vpack.c.bf16 %v970, %v970
      %v1035 = vpack.c.bf16 %v971, %v971
      %v1036 = vpack.c.bf16 %v972, %v972
      %v1037 = vpack.c.bf16 %v973, %v973
      %v1038 = vpack.c.bf16 %v974, %v974
      %v1039 = vpack.c.bf16 %v975, %v975
      %v1040 = vpack.c.bf16 %v976, %v976
      %v1041 = vpack.c.bf16 %v977, %v977
      %v1042 = vpack.c.bf16 %v978, %v978
      %v1043 = vpack.c.bf16 %v979, %v979
      %v1044 = vpack.c.bf16 %v980, %v980
      %v1045 = vpack.c.bf16 %v981, %v981
      %v1046 = vpack.c.bf16 %v982, %v982
      %v1047 = vpack.c.bf16 %v983, %v983
      %v1048 = vpack.c.bf16 %v984, %v984
      %v1049 = vpack.c.bf16 %v985, %v985
      %v1050 = vpack.c.bf16 %v986, %v986
      %v1051 = vpack.c.bf16 %v987, %v987
      %vm1052 = vcmask 519168
      %1053 = vst.msk [vmem:[%s199] sm:$0xf] %vm1052, %v988
      %1054 = vst.msk [vmem:[%s199 + $0x4] sm:$0xf] %vm1052, %v989
      %1055 = vst.msk [vmem:[%s199 + $0x8] sm:$0xf] %vm1052, %v990
      %1056 = vst.msk [vmem:[%s199 + $0xc] sm:$0xf] %vm1052, %v991
      %1057 = vst.msk [vmem:[%s199 + $0x10] sm:$0xf] %vm1052, %v992
      %1058 = vst.msk [vmem:[%s199 + $0x14] sm:$0xf] %vm1052, %v993
      %1059 = vst.msk [vmem:[%s199 + $0x18] sm:$0xf] %vm1052, %v994
      %1060 = vst.msk [vmem:[%s199 + $0x1c] sm:$0xf] %vm1052, %v995
      %1061 = vst.msk [vmem:[%s199 + $0x20] sm:$0xf] %vm1052, %v996
      %1062 = vst.msk [vmem:[%s199 + $0x24] sm:$0xf] %vm1052, %v997
      %1063 = vst.msk [vmem:[%s199 + $0x28] sm:$0xf] %vm1052, %v998
      %1064 = vst.msk [vmem:[%s199 + $0x2c] sm:$0xf] %vm1052, %v999
      %1065 = vst.msk [vmem:[%s199 + $0x30] sm:$0xf] %vm1052, %v1000
      %1066 = vst.msk [vmem:[%s199 + $0x34] sm:$0xf] %vm1052, %v1001
      %1067 = vst.msk [vmem:[%s199 + $0x38] sm:$0xf] %vm1052, %v1002
      %1068 = vst.msk [vmem:[%s199 + $0x3c] sm:$0xf] %vm1052, %v1003
      %1069 = vst.msk [vmem:[%s199 + $0x40] sm:$0xf] %vm1052, %v1004
      %1070 = vst.msk [vmem:[%s199 + $0x44] sm:$0xf] %vm1052, %v1005
      %1071 = vst.msk [vmem:[%s199 + $0x48] sm:$0xf] %vm1052, %v1006
      %1072 = vst.msk [vmem:[%s199 + $0x4c] sm:$0xf] %vm1052, %v1007
      %1073 = vst.msk [vmem:[%s199 + $0x50] sm:$0xf] %vm1052, %v1008
      %1074 = vst.msk [vmem:[%s199 + $0x54] sm:$0xf] %vm1052, %v1009
      %1075 = vst.msk [vmem:[%s199 + $0x58] sm:$0xf] %vm1052, %v1010
      %1076 = vst.msk [vmem:[%s199 + $0x5c] sm:$0xf] %vm1052, %v1011
      %1077 = vst.msk [vmem:[%s199 + $0x60] sm:$0xf] %vm1052, %v1012
      %1078 = vst.msk [vmem:[%s199 + $0x64] sm:$0xf] %vm1052, %v1013
      %1079 = vst.msk [vmem:[%s199 + $0x68] sm:$0xf] %vm1052, %v1014
      %1080 = vst.msk [vmem:[%s199 + $0x6c] sm:$0xf] %vm1052, %v1015
      %1081 = vst.msk [vmem:[%s199 + $0x70] sm:$0xf] %vm1052, %v1016
      %1082 = vst.msk [vmem:[%s199 + $0x74] sm:$0xf] %vm1052, %v1017
      %1083 = vst.msk [vmem:[%s199 + $0x78] sm:$0xf] %vm1052, %v1018
      %1084 = vst.msk [vmem:[%s199 + $0x7c] sm:$0xf] %vm1052, %v1019
      %1085 = vst.msk [vmem:[%s199 + $0x80] sm:$0xf] %vm1052, %v1020
      %1086 = vst.msk [vmem:[%s199 + $0x84] sm:$0xf] %vm1052, %v1021
      %1087 = vst.msk [vmem:[%s199 + $0x88] sm:$0xf] %vm1052, %v1022
      %1088 = vst.msk [vmem:[%s199 + $0x8c] sm:$0xf] %vm1052, %v1023
      %1089 = vst.msk [vmem:[%s199 + $0x90] sm:$0xf] %vm1052, %v1024
      %1090 = vst.msk [vmem:[%s199 + $0x94] sm:$0xf] %vm1052, %v1025
      %1091 = vst.msk [vmem:[%s199 + $0x98] sm:$0xf] %vm1052, %v1026
      %1092 = vst.msk [vmem:[%s199 + $0x9c] sm:$0xf] %vm1052, %v1027
      %1093 = vst.msk [vmem:[%s199 + $0xa0] sm:$0xf] %vm1052, %v1028
      %1094 = vst.msk [vmem:[%s199 + $0xa4] sm:$0xf] %vm1052, %v1029
      %1095 = vst.msk [vmem:[%s199 + $0xa8] sm:$0xf] %vm1052, %v1030
      %1096 = vst.msk [vmem:[%s199 + $0xac] sm:$0xf] %vm1052, %v1031
      %1097 = vst.msk [vmem:[%s199 + $0xb0] sm:$0xf] %vm1052, %v1032
      %1098 = vst.msk [vmem:[%s199 + $0xb4] sm:$0xf] %vm1052, %v1033
      %1099 = vst.msk [vmem:[%s199 + $0xb8] sm:$0xf] %vm1052, %v1034
      %1100 = vst.msk [vmem:[%s199 + $0xbc] sm:$0xf] %vm1052, %v1035
      %1101 = vst.msk [vmem:[%s199 + $0xc0] sm:$0xf] %vm1052, %v1036
      %1102 = vst.msk [vmem:[%s199 + $0xc4] sm:$0xf] %vm1052, %v1037
      %1103 = vst.msk [vmem:[%s199 + $0xc8] sm:$0xf] %vm1052, %v1038
      %1104 = vst.msk [vmem:[%s199 + $0xcc] sm:$0xf] %vm1052, %v1039
      %1105 = vst.msk [vmem:[%s199 + $0xd0] sm:$0xf] %vm1052, %v1040
      %1106 = vst.msk [vmem:[%s199 + $0xd4] sm:$0xf] %vm1052, %v1041
      %1107 = vst.msk [vmem:[%s199 + $0xd8] sm:$0xf] %vm1052, %v1042
      %1108 = vst.msk [vmem:[%s199 + $0xdc] sm:$0xf] %vm1052, %v1043
      %1109 = vst.msk [vmem:[%s199 + $0xe0] sm:$0xf] %vm1052, %v1044
      %1110 = vst.msk [vmem:[%s199 + $0xe4] sm:$0xf] %vm1052, %v1045
      %1111 = vst.msk [vmem:[%s199 + $0xe8] sm:$0xf] %vm1052, %v1046
      %1112 = vst.msk [vmem:[%s199 + $0xec] sm:$0xf] %vm1052, %v1047
      %1113 = vst.msk [vmem:[%s199 + $0xf0] sm:$0xf] %vm1052, %v1048
      %1114 = vst.msk [vmem:[%s199 + $0xf4] sm:$0xf] %vm1052, %v1049
      %1115 = vst.msk [vmem:[%s199 + $0xf8] sm:$0xf] %vm1052, %v1050
      %1116 = vst.msk [vmem:[%s199 + $0xfc] sm:$0xf] %vm1052, %v1051
      %s1117 = smul.u32 64, %s15
      %p1118 = scmp.lt.s32.totalorder %s1117, 255
      %s1119 = scalar_select %p1118, %s1117, 255
      %s1120 = smul.addr %s1119, 4
      %s1121 = scalar_lea.vmem %s4, %s1120
      // Predicated region
      $region37: #{tpu_custom_call.1} parent=35 // pred_check
        %p1122 = pneg %p122
      $region38: #{tpu_custom_call.1} parent=35 // pred_check_branch
        %1124 = sbr.rel (%p1122) target = $region40
      $region39: #{tpu_custom_call.1} parent=35 // pred_region
        %s1125 = smul.u32 64, %s15
      $region40: #{tpu_custom_call.1} parent=35 // pred_fallthru
        _
    $region36: #{tpu_custom_call.1} parent=5 // pred_fallthru
      _
    %p1126 = scmp.le.s32.totalorder 2, %s10
    // Predicated region
    $region41: #{tpu_custom_call.1} parent=5 // pred_check
      %p1127 = pneg %p1126
    $region42: #{tpu_custom_call.1} parent=5 // pred_check_branch
      %1129 = sbr.rel (%p1127) target = $region44
    $region43: #{tpu_custom_call.1} parent=5 // pred_region
      %s1130 = ssub.s32 %s10, 2
      // Predicated region
      $region45: #{tpu_custom_call.1} parent=43 // pred_check
        %p1131 = pneg %p128
      $region46: #{tpu_custom_call.1} parent=43 // pred_check_branch
        %1133 = sbr.rel (%p1131) target = $region48
      $region47: #{tpu_custom_call.1} parent=43 // pred_region
        %s1134 = smul.u32 64, %s16
        %p1135 = scmp.lt.s32.totalorder %s1134, 255
        %s1136 = scalar_select %p1135, %s1134, 255
        %s1137 = smul.addr %s1136, 4
        %s1138 = scalar_lea.vmem %s4, %s1137
      $region48: #{tpu_custom_call.1} parent=43 // pred_fallthru
        _
    $region44: #{tpu_custom_call.1} parent=5 // pred_fallthru
      _
  $region6: #{tpu_custom_call.1} parent=0 // loop_footer
    %s14 = sadd.s32 1, %s10
  $region7: #{tpu_custom_call.1} parent=0 // loop_footer_branch
    %9 = sbr.rel target = $region3
  $region8: #{tpu_custom_call.1} parent=0 // loop_exit
    _

</llo_original>
